<compile_context>
chip_gen: v5e
topology: v5e:2x2
jax: 0.10.0
libtpu: 0.0.40
codegen_flags: <defaults>
</compile_context>

<pallas_src>
import functools

import jax
import jax.numpy as jnp
from jax.experimental import pallas as pl
from jax.experimental.pallas import tpu as pltpu

INPUT_SIZE = 8
HIDDEN_SIZE = 15
OUTPUT_SIZE = 2

LANE = 128
PAD_H = 128            # hidden features padded to lane width
PAD_O = 128            # packed-output lane width (hidden | logits)
LOGIT_OFFSET = 16      # logits live in lanes [16, 18) of the packed output

DEFAULT_TB = 2048      # batch tile; a few MiB of double-buffered VMEM -> safe on v5e/v6e/v7x


def _round_up(n, m):
    return ((n + m - 1) // m) * m


def _mlp_kernel(x_ref, w1_ref, b1_ref, w2_ref, b2_ref, w3_ref, b3_ref, out_ref):
    x = x_ref[...]

    # fc1 + relu. Padded weight/bias columns are zero -> h1[:, 15:] == 0 exactly.
    h1 = jnp.maximum(
        jnp.dot(x, w1_ref[...], preferred_element_type=jnp.float32) + b1_ref[...],
        0.0,
    )

    # fc2 + relu (h2[:, 15:] == 0 as well).
    h2 = jnp.maximum(
        jnp.dot(h1, w2_ref[...], preferred_element_type=jnp.float32) + b2_ref[...],
        0.0,
    )

    # fc3: w3/b3 are padded so the two logits land in lanes [16, 18) and every
    # other lane is exactly zero.  h1 is valid in lanes [0, 15) and zero
    # elsewhere, so one VPU add packs hidden + logits into a single lane-dense
    # 128-wide tile -> one unmasked output store, half the HBM writeback.
    logits = jnp.dot(h2, w3_ref[...], preferred_element_type=jnp.float32) + b3_ref[...]
    out_ref[...] = h1 + logits


@functools.partial(jax.jit, static_argnames=("tb",))
def base_model_forward(x, padded_params, *, tb=DEFAULT_TB):
    """x: (B, INPUT_SIZE) f32.  padded_params: output of pad_params().

    Returns (logits (B, OUTPUT_SIZE), hidden (B, HIDDEN_SIZE)).
    """
    w1, b1, w2, b2, w3, b3 = padded_params
    B = x.shape[0]

    # Batch tile: at most `tb`, at least the (8-aligned) batch itself.
    tb = min(tb, _round_up(B, 8))
    B_pad = _round_up(B, tb)
    if B_pad != B:
        x = jnp.pad(x, ((0, B_pad - B), (0, 0)))
    grid = (B_pad // tb,)

    # VMEM budget: double-buffered x tile (lane-padded to 128 in VMEM) +
    # packed output tile + resident weights/biases, plus headroom.
    tile_bytes = 4 * tb * (LANE + PAD_O)
    weight_bytes = 4 * (8 * PAD_H + PAD_H * PAD_H + PAD_H * PAD_O + 3 * 8 * LANE)
    vmem_limit = 2 * (tile_bytes + weight_bytes) + (4 << 20)

    cost = pl.CostEstimate(
        flops=2 * B * (INPUT_SIZE * HIDDEN_SIZE
                       + HIDDEN_SIZE * HIDDEN_SIZE
                       + HIDDEN_SIZE * OUTPUT_SIZE),
        transcendentals=0,
        bytes_accessed=4 * (B * (INPUT_SIZE + HIDDEN_SIZE + OUTPUT_SIZE)
                            + INPUT_SIZE * HIDDEN_SIZE
                            + HIDDEN_SIZE * HIDDEN_SIZE
                            + HIDDEN_SIZE * OUTPUT_SIZE
                            + 2 * HIDDEN_SIZE + OUTPUT_SIZE),
    )

    # Activations tiled along batch; weights/biases resident across iterations.
    batch_spec = lambda feat: pl.BlockSpec((tb, feat), lambda i: (i, 0))
    resident = lambda shape: pl.BlockSpec(shape, lambda i: (0, 0))

    packed = pl.pallas_call(
        _mlp_kernel,
        out_shape=jax.ShapeDtypeStruct((B_pad, PAD_O), jnp.float32),
        grid=grid,
        in_specs=[
            batch_spec(INPUT_SIZE),
            resident((INPUT_SIZE, PAD_H)), resident((1, PAD_H)),
            resident((PAD_H, PAD_H)), resident((1, PAD_H)),
            resident((PAD_H, PAD_O)), resident((1, PAD_O)),
        ],
        out_specs=batch_spec(PAD_O),
        compiler_params=pltpu.CompilerParams(
            dimension_semantics=("parallel",),
            vmem_limit_bytes=vmem_limit,
        ),
        cost_estimate=cost,
    )(x, w1, b1, w2, b2, w3, b3)

    logits = packed[:B, LOGIT_OFFSET:LOGIT_OFFSET + OUTPUT_SIZE]
    hidden = packed[:B, :HIDDEN_SIZE]
    return logits, hidden


def init_params(key):
    """Deterministic parameter init; logical shapes mirror BaseModel's Linears."""
    k1, k2, k3, k4, k5, k6 = jax.random.split(key, 6)
    scale = 0.1
    w1 = scale * jax.random.normal(k1, (INPUT_SIZE, HIDDEN_SIZE), jnp.float32)
    b1 = scale * jax.random.normal(k2, (1, HIDDEN_SIZE), jnp.float32)
    w2 = scale * jax.random.normal(k3, (HIDDEN_SIZE, HIDDEN_SIZE), jnp.float32)
    b2 = scale * jax.random.normal(k4, (1, HIDDEN_SIZE), jnp.float32)
    w3 = scale * jax.random.normal(k5, (HIDDEN_SIZE, OUTPUT_SIZE), jnp.float32)
    b3 = scale * jax.random.normal(k6, (1, OUTPUT_SIZE), jnp.float32)
    return (w1, b1, w2, b2, w3, b3)


def pad_params(params):
    """One-time lane padding of weights/biases to 128-wide feature dims.

    Zero padding keeps the math exact: padded hidden columns stay 0 through
    bias-add and ReLU.  fc3 is padded with its two columns placed at lanes
    [LOGIT_OFFSET, LOGIT_OFFSET+2) so the kernel can pack hidden + logits
    into one lane-dense output tile with a single add.
    """
    w1, b1, w2, b2, w3, b3 = params
    w1p = jnp.zeros((INPUT_SIZE, PAD_H), jnp.float32).at[:, :HIDDEN_SIZE].set(w1)
    b1p = jnp.zeros((1, PAD_H), jnp.float32).at[:, :HIDDEN_SIZE].set(b1)
    w2p = jnp.zeros((PAD_H, PAD_H), jnp.float32).at[:HIDDEN_SIZE, :HIDDEN_SIZE].set(w2)
    b2p = jnp.zeros((1, PAD_H), jnp.float32).at[:, :HIDDEN_SIZE].set(b2)
    w3p = jnp.zeros((PAD_H, PAD_O), jnp.float32).at[
        :HIDDEN_SIZE, LOGIT_OFFSET:LOGIT_OFFSET + OUTPUT_SIZE].set(w3)
    b3p = jnp.zeros((1, PAD_O), jnp.float32).at[
        :, LOGIT_OFFSET:LOGIT_OFFSET + OUTPUT_SIZE].set(b3)
    return (w1p, b1p, w2p, b2p, w3p, b3p)


def reference_forward(x, params):
    """Plain-JAX reference mirroring the PyTorch forward."""
    w1, b1, w2, b2, w3, b3 = params
    h1 = jnp.maximum(x @ w1 + b1, 0.0)
    h2 = jnp.maximum(h1 @ w2 + b2, 0.0)
    out = h2 @ w3 + b3
    return out, h1


if __name__ == "__main__":
    key = jax.random.PRNGKey(0)
    kx, kp = jax.random.split(key)
    params = init_params(kp)
    padded_params = pad_params(params)

    # Small aligned batch.
    batch = 8
    x = jax.random.normal(kx, (batch, INPUT_SIZE), jnp.float32)
    out, hidden = jax.block_until_ready(base_model_forward(x, padded_params))
    ref_out, ref_hidden = reference_forward(x, params)
    assert out.shape == (batch, OUTPUT_SIZE)
    assert hidden.shape == (batch, HIDDEN_SIZE)
    assert jnp.allclose(out, ref_out, atol=1e-5, rtol=1e-5)
    assert jnp.allclose(hidden, ref_hidden, atol=1e-5, rtol=1e-5)

    # Non-multiple-of-8 batch exercises the padding/slicing path.
    batch2 = 5
    x2 = jax.random.normal(jax.random.PRNGKey(1), (batch2, INPUT_SIZE), jnp.float32)
    out2, hidden2 = jax.block_until_ready(base_model_forward(x2, padded_params))
    ref_out2, ref_hidden2 = reference_forward(x2, params)
    assert out2.shape == (batch2, OUTPUT_SIZE)
    assert hidden2.shape == (batch2, HIDDEN_SIZE)
    assert jnp.allclose(out2, ref_out2, atol=1e-5, rtol=1e-5)
    assert jnp.allclose(hidden2, ref_hidden2, atol=1e-5, rtol=1e-5)

    # Larger batch to exercise the multi-tile pipelined path.
    batch3 = 4096
    x3 = jax.random.normal(jax.random.PRNGKey(2), (batch3, INPUT_SIZE), jnp.float32)
    out3, hidden3 = jax.block_until_ready(base_model_forward(x3, padded_params))
    ref_out3, ref_hidden3 = reference_forward(x3, params)
    assert jnp.allclose(out3, ref_out3, atol=1e-5, rtol=1e-5)
    assert jnp.allclose(hidden3, ref_hidden3, atol=1e-5, rtol=1e-5)

    print("KERNEL_OK")
</pallas_src>

<mosaic_0001>
module attributes {stable_mosaic.version = 11 : i64} {
  func.func @_mlp_kernel(%arg0: i32, %arg1: memref<8x8xf32, #tpu.memory_space<vmem>>, %arg2: memref<8x128xf32, #tpu.memory_space<vmem>>, %arg3: memref<1x128xf32, #tpu.memory_space<vmem>>, %arg4: memref<128x128xf32, #tpu.memory_space<vmem>>, %arg5: memref<1x128xf32, #tpu.memory_space<vmem>>, %arg6: memref<128x128xf32, #tpu.memory_space<vmem>>, %arg7: memref<1x128xf32, #tpu.memory_space<vmem>>, %arg8: memref<8x128xf32, #tpu.memory_space<vmem>>) attributes {dimension_semantics = [#tpu.dimension_semantics<parallel>], iteration_bounds = array<i64: 1>, scalar_prefetch = 0 : i64, scratch_operands = 0 : i64, tpu.core_type = #tpu.core_type<tc>, window_params = [{transform_indices = @transform_0, window_bounds = array<i64: 8, 8>}, {pipeline_mode = #tpu.pipeline_mode<synchronous>, transform_indices = @transform_1, window_bounds = array<i64: 8, 128>}, {pipeline_mode = #tpu.pipeline_mode<synchronous>, transform_indices = @transform_2, window_bounds = array<i64: 1, 128>}, {pipeline_mode = #tpu.pipeline_mode<synchronous>, transform_indices = @transform_3, window_bounds = array<i64: 128, 128>}, {pipeline_mode = #tpu.pipeline_mode<synchronous>, transform_indices = @transform_4, window_bounds = array<i64: 1, 128>}, {pipeline_mode = #tpu.pipeline_mode<synchronous>, transform_indices = @transform_5, window_bounds = array<i64: 128, 128>}, {pipeline_mode = #tpu.pipeline_mode<synchronous>, transform_indices = @transform_6, window_bounds = array<i64: 1, 128>}, {transform_indices = @transform_7, window_bounds = array<i64: 8, 128>}]} {
    %c0 = arith.constant 0 : index
    %c0_0 = arith.constant 0 : index
    %0 = vector.load %arg1[%c0, %c0_0] : memref<8x8xf32, #tpu.memory_space<vmem>>, vector<8x8xf32>
    %c0_1 = arith.constant 0 : index
    %c0_2 = arith.constant 0 : index
    %1 = vector.load %arg2[%c0_1, %c0_2] : memref<8x128xf32, #tpu.memory_space<vmem>>, vector<8x128xf32>
    %cst = arith.constant dense<0.000000e+00> : vector<8x128xf32>
    %2 = tpu.matmul %0, %1, %cst {dimension_numbers = #tpu.dot_dimension_numbers<[1], [0], [0], [1], [0, 0, 1, 1], [], []>} : vector<8x8xf32>, vector<8x128xf32>, vector<8x128xf32> -> vector<8x128xf32>
    %c0_3 = arith.constant 0 : index
    %c0_4 = arith.constant 0 : index
    %3 = vector.load %arg3[%c0_3, %c0_4] : memref<1x128xf32, #tpu.memory_space<vmem>>, vector<1x128xf32>
    %4 = vector.broadcast %3 : vector<1x128xf32> to vector<8x128xf32>
    %5 = arith.addf %2, %4 : vector<8x128xf32>
    %cst_5 = arith.constant 0.000000e+00 : f32
    %6 = vector.broadcast %cst_5 : f32 to vector<8x128xf32>
    %7 = arith.maximumf %5, %6 : vector<8x128xf32>
    %c0_6 = arith.constant 0 : index
    %c0_7 = arith.constant 0 : index
    %8 = vector.load %arg4[%c0_6, %c0_7] : memref<128x128xf32, #tpu.memory_space<vmem>>, vector<128x128xf32>
    %cst_8 = arith.constant dense<0.000000e+00> : vector<8x128xf32>
    %9 = tpu.matmul %7, %8, %cst_8 {dimension_numbers = #tpu.dot_dimension_numbers<[1], [0], [0], [1], [0, 0, 1, 1], [], []>} : vector<8x128xf32>, vector<128x128xf32>, vector<8x128xf32> -> vector<8x128xf32>
    %c0_9 = arith.constant 0 : index
    %c0_10 = arith.constant 0 : index
    %10 = vector.load %arg5[%c0_9, %c0_10] : memref<1x128xf32, #tpu.memory_space<vmem>>, vector<1x128xf32>
    %11 = vector.broadcast %10 : vector<1x128xf32> to vector<8x128xf32>
    %12 = arith.addf %9, %11 : vector<8x128xf32>
    %cst_11 = arith.constant 0.000000e+00 : f32
    %13 = vector.broadcast %cst_11 : f32 to vector<8x128xf32>
    %14 = arith.maximumf %12, %13 : vector<8x128xf32>
    %c0_12 = arith.constant 0 : index
    %c0_13 = arith.constant 0 : index
    %15 = vector.load %arg6[%c0_12, %c0_13] : memref<128x128xf32, #tpu.memory_space<vmem>>, vector<128x128xf32>
    %cst_14 = arith.constant dense<0.000000e+00> : vector<8x128xf32>
    %16 = tpu.matmul %14, %15, %cst_14 {dimension_numbers = #tpu.dot_dimension_numbers<[1], [0], [0], [1], [0, 0, 1, 1], [], []>} : vector<8x128xf32>, vector<128x128xf32>, vector<8x128xf32> -> vector<8x128xf32>
    %c0_15 = arith.constant 0 : index
    %c0_16 = arith.constant 0 : index
    %17 = vector.load %arg7[%c0_15, %c0_16] : memref<1x128xf32, #tpu.memory_space<vmem>>, vector<1x128xf32>
    %18 = vector.broadcast %17 : vector<1x128xf32> to vector<8x128xf32>
    %19 = arith.addf %16, %18 : vector<8x128xf32>
    %20 = arith.addf %7, %19 : vector<8x128xf32>
    %c0_17 = arith.constant 0 : index
    %c0_18 = arith.constant 0 : index
    %21 = vector.load %arg8[%c0_17, %c0_18] : memref<8x128xf32, #tpu.memory_space<vmem>>, vector<8x128xf32>
    tpu.vector_store %arg8[%c0_17, %c0_18], %20 {strides = array<i32>} : memref<8x128xf32, #tpu.memory_space<vmem>>, vector<8x128xf32>,
    return
  }
  func.func @transform_0(%arg0: i32) -> (i32, i32) {
    %c0_i32 = arith.constant 0 : i32
    %c0_i32_0 = arith.constant 0 : i32
    return %arg0, %c0_i32 : i32, i32
  }
  func.func @transform_1(%arg0: i32) -> (i32, i32) {
    %c0_i32 = arith.constant 0 : i32
    %c0_i32_0 = arith.constant 0 : i32
    %c0_i32_1 = arith.constant 0 : i32
    return %c0_i32, %c0_i32_0 : i32, i32
  }
  func.func @transform_2(%arg0: i32) -> (i32, i32) {
    %c0_i32 = arith.constant 0 : i32
    %c0_i32_0 = arith.constant 0 : i32
    %c0_i32_1 = arith.constant 0 : i32
    return %c0_i32, %c0_i32_0 : i32, i32
  }
  func.func @transform_3(%arg0: i32) -> (i32, i32) {
    %c0_i32 = arith.constant 0 : i32
    %c0_i32_0 = arith.constant 0 : i32
    %c0_i32_1 = arith.constant 0 : i32
    return %c0_i32, %c0_i32_0 : i32, i32
  }
  func.func @transform_4(%arg0: i32) -> (i32, i32) {
    %c0_i32 = arith.constant 0 : i32
    %c0_i32_0 = arith.constant 0 : i32
    %c0_i32_1 = arith.constant 0 : i32
    return %c0_i32, %c0_i32_0 : i32, i32
  }
  func.func @transform_5(%arg0: i32) -> (i32, i32) {
    %c0_i32 = arith.constant 0 : i32
    %c0_i32_0 = arith.constant 0 : i32
    %c0_i32_1 = arith.constant 0 : i32
    return %c0_i32, %c0_i32_0 : i32, i32
  }
  func.func @transform_6(%arg0: i32) -> (i32, i32) {
    %c0_i32 = arith.constant 0 : i32
    %c0_i32_0 = arith.constant 0 : i32
    %c0_i32_1 = arith.constant 0 : i32
    return %c0_i32, %c0_i32_0 : i32, i32
  }
  func.func @transform_7(%arg0: i32) -> (i32, i32) {
    %c0_i32 = arith.constant 0 : i32
    %c0_i32_0 = arith.constant 0 : i32
    return %arg0, %c0_i32 : i32, i32
  }
}

</mosaic_0001>

<llo_original>
// kernel: base_model_forward.1
$region0: #{base_model_forward.1}
  #allocation0 [shape = 'u32[]', space=smem, size = 0x4, offset = 0x4, fixed_abs, tag = 'smem constant byte address 0x4 - core index']
  #allocation1 [shape = 'u32[72,128]{1,0:T(1,128)}', space=vmem, size = 0x9000, scoped, tag = 'internal scratch']
  %s0 = inlined_call_operand.hbm [shape: f32[8,8], index: 0, kind: input, shape index: {}]
  %s1 = inlined_call_operand.hbm [shape: f32[8,128], index: 1, kind: input, shape index: {}]
  %s2 = inlined_call_operand.vmem [shape: f32[1,128], index: 2, kind: input, shape index: {}]
  %s3 = inlined_call_operand.hbm [shape: f32[128,128], index: 3, kind: input, shape index: {}]
  %s4 = inlined_call_operand.vmem [shape: f32[1,128], index: 4, kind: input, shape index: {}]
  %s5 = inlined_call_operand.hbm [shape: f32[128,128], index: 5, kind: input, shape index: {}]
  %s6 = inlined_call_operand.vmem [shape: f32[1,128], index: 6, kind: input, shape index: {}]
  %s7 = inlined_call_operand.vmem [shape: f32[8,128], index: 7, kind: output, shape index: {}]
  %s8 = sld [smem:[#allocation0]]
  $region54: #{base_model_forward.1} parent=0
    _
  %s10 = ssub.s32 1, %s8
  %s11 = scalar_select 0, %s10, %s8
  $region1: #{base_model_forward.1} parent=0
    #allocation2 [shape = 'u8[4096]{0}', space=vmem, size = 0x1000, scoped, tag = 'input window, operand 0, single buffered']
    #allocation3 [shape = 's32[1]{0}', space=sflag, size = 0x4, scoped, tag = 'scoped memory for base_model_forward.1']
    #allocation4 [shape = 'u8[4096]{0}', space=vmem, size = 0x1000, scoped, tag = 'input window, operand 1, single buffered']
    #allocation5 [shape = 's32[1]{0}', space=sflag, size = 0x4, scoped, tag = 'scoped memory for base_model_forward.1']
    #allocation6 [shape = 'u8[65536]{0}', space=vmem, size = 0x10000, scoped, tag = 'input window, operand 3, single buffered']
    #allocation7 [shape = 'u8[65536]{0}', space=vmem, size = 0x10000, scoped, tag = 'input window, operand 5, single buffered']
    #allocation8 [shape = 's32[1]{0}', space=sflag, size = 0x4, scoped, tag = 'scoped memory for base_model_forward.1']
    %12 = vsyncpa [#allocation3], 0
    %13 = vsyncpa [#allocation5], 0
    %14 = vsyncpa [#allocation8], 0
    // Predicated region
    $region2: #{base_model_forward.1} parent=1 // pred_check
      _
    $region3: #{base_model_forward.1} parent=1 // pred_check_branch
      %16 = sbr.rel (0) target = $region5
    $region4: #{base_model_forward.1} parent=1 // pred_region
      %18 = vsyncadd [#allocation3], 0
      %s20 = sshll.u32 %s0, 4
      %s21 = int_to_ptr.hbm [resolvable:$true] %s20
      %s22 = sshll.u32 [#allocation2], 4
      %s23 = int_to_ptr.vmem [resolvable:$true] %s22
      %25 = dma.hbm_to_vmem [thread:$0]  %s21, 128, %s23, [#allocation3]
    $region5: #{base_model_forward.1} parent=1 // pred_fallthru
      _
    // Predicated region
    $region6: #{base_model_forward.1} parent=1 // pred_check
      _
    $region7: #{base_model_forward.1} parent=1 // pred_check_branch
      %27 = sbr.rel (0) target = $region9
    $region8: #{base_model_forward.1} parent=1 // pred_region
      %29 = vsyncadd [#allocation5], 0
      %s31 = sshll.u32 %s1, 4
      %s32 = int_to_ptr.hbm [resolvable:$true] %s31
      %s33 = sshll.u32 [#allocation4], 4
      %s34 = int_to_ptr.vmem [resolvable:$true] %s33
      %36 = dma.hbm_to_vmem [thread:$0]  %s32, 128, %s34, [#allocation5]
    $region9: #{base_model_forward.1} parent=1 // pred_fallthru
      _
    // Predicated region
    $region10: #{base_model_forward.1} parent=1 // pred_check
      _
    $region11: #{base_model_forward.1} parent=1 // pred_check_branch
      %38 = sbr.rel (0) target = $region13
    $region12: #{base_model_forward.1} parent=1 // pred_region
      _
    $region13: #{base_model_forward.1} parent=1 // pred_fallthru
      _
    // Predicated region
    $region14: #{base_model_forward.1} parent=1 // pred_check
      _
    $region15: #{base_model_forward.1} parent=1 // pred_check_branch
      %40 = sbr.rel (0) target = $region17
    $region16: #{base_model_forward.1} parent=1 // pred_region
      %42 = vsyncadd [#allocation5], 0
      %s43 = sshll.u32 %s3, 4
      %s44 = int_to_ptr.hbm [resolvable:$true] %s43
      %s45 = sshll.u32 [#allocation6], 4
      %s46 = int_to_ptr.vmem [resolvable:$true] %s45
      %51 = dma.hbm_to_vmem [thread:$0]  %s44, 2048, %s46, [#allocation5], 128, 128, 8
    $region17: #{base_model_forward.1} parent=1 // pred_fallthru
      _
    // Predicated region
    $region18: #{base_model_forward.1} parent=1 // pred_check
      _
    $region19: #{base_model_forward.1} parent=1 // pred_check_branch
      %53 = sbr.rel (0) target = $region21
    $region20: #{base_model_forward.1} parent=1 // pred_region
      _
    $region21: #{base_model_forward.1} parent=1 // pred_fallthru
      _
    // Predicated region
    $region22: #{base_model_forward.1} parent=1 // pred_check
      _
    $region23: #{base_model_forward.1} parent=1 // pred_check_branch
      %55 = sbr.rel (0) target = $region25
    $region24: #{base_model_forward.1} parent=1 // pred_region
      %57 = vsyncadd [#allocation8], 0
      %s58 = sshll.u32 %s5, 4
      %s59 = int_to_ptr.hbm [resolvable:$true] %s58
      %s60 = sshll.u32 [#allocation7], 4
      %s61 = int_to_ptr.vmem [resolvable:$true] %s60
      %66 = dma.hbm_to_vmem [thread:$0]  %s59, 2048, %s61, [#allocation8], 128, 128, 8
    $region25: #{base_model_forward.1} parent=1 // pred_fallthru
      _
    // Predicated region
    $region26: #{base_model_forward.1} parent=1 // pred_check
      _
    $region27: #{base_model_forward.1} parent=1 // pred_check_branch
      %68 = sbr.rel (0) target = $region29
    $region28: #{base_model_forward.1} parent=1 // pred_region
      _
    $region29: #{base_model_forward.1} parent=1 // pred_fallthru
      _
    // Predicated region
    $region30: #{base_model_forward.1} parent=1 // pred_check
      _
    $region31: #{base_model_forward.1} parent=1 // pred_check_branch
      %70 = sbr.rel (0) target = $region33
    $region32: #{base_model_forward.1} parent=1 // pred_region
      %72 = dma.done [#allocation3], 128
    $region33: #{base_model_forward.1} parent=1 // pred_fallthru
      _
    // Predicated region
    $region34: #{base_model_forward.1} parent=1 // pred_check
      _
    $region35: #{base_model_forward.1} parent=1 // pred_check_branch
      %74 = sbr.rel (0) target = $region37
    $region36: #{base_model_forward.1} parent=1 // pred_region
      %76 = dma.done [#allocation5], 128
    $region37: #{base_model_forward.1} parent=1 // pred_fallthru
      _
    // Predicated region
    $region38: #{base_model_forward.1} parent=1 // pred_check
      _
    $region39: #{base_model_forward.1} parent=1 // pred_check_branch
      %78 = sbr.rel (0) target = $region41
    $region40: #{base_model_forward.1} parent=1 // pred_region
      %80 = dma.done [#allocation5], 2048
    $region41: #{base_model_forward.1} parent=1 // pred_fallthru
      _
    // Predicated region
    $region42: #{base_model_forward.1} parent=1 // pred_check
      _
    $region43: #{base_model_forward.1} parent=1 // pred_check_branch
      %82 = sbr.rel (0) target = $region45
    $region44: #{base_model_forward.1} parent=1 // pred_region
      %84 = dma.done [#allocation8], 2048
    $region45: #{base_model_forward.1} parent=1 // pred_fallthru
      _
    %v85 = vld [vmem:[#allocation2] sm:$0xff]
    %v86 = vld [vmem:[#allocation4] sm:$0xff]
    %v87 = vld [vmem:[%s2] sm:$0x1]
    %v89 = vperm.slane %v87, 0
    %vm91 = vcmask 64512
    %v93 = vsel %vm91, %v85, 0
    %95 = vmatpush.msra.mxu0 0.0
    %96 = vmatpush.msra.mxu0 0.0
    %97 = vmatpush.msra.mxu0 0.0
    %98 = vmatpush.msra.mxu0 0.0
    %99 = vmatpush.msra.mxu0 0.0
    %100 = vmatpush.msra.mxu0 0.0
    %101 = vmatpush.msra.mxu0 0.0
    %102 = vmatpush.msra.mxu0 0.0
    %103 = vmatpush.msra.mxu0 0.0
    %104 = vmatpush.msra.mxu0 0.0
    %105 = vmatpush.msra.mxu0 0.0
    %106 = vmatpush.msra.mxu0 0.0
    %107 = vmatpush.msra.mxu0 0.0
    %108 = vmatpush.msra.mxu0 0.0
    %109 = vmatpush.msra.mxu0 0.0
    %110 = vmatpush.msra.mxu0 %v86
    %111 = vmatmul.f32.gmra.mxu0 %v93
    %v112 = vpop.f32.mrf.mxu0
    %v113 = vadd.f32 %v89, %v112
    %114 = vdwg.mxu0
    %v115 = vmax.f32 %v113, 0.0
    %v116 = vld [vmem:[#allocation6] sm:$0xff]
    %v117 = vld [vmem:[#allocation6 + $0x8] sm:$0xff]
    %v118 = vld [vmem:[#allocation6 + $0x10] sm:$0xff]
    %v119 = vld [vmem:[#allocation6 + $0x18] sm:$0xff]
    %v120 = vld [vmem:[#allocation6 + $0x20] sm:$0xff]
    %v121 = vld [vmem:[#allocation6 + $0x28] sm:$0xff]
    %v122 = vld [vmem:[#allocation6 + $0x30] sm:$0xff]
    %v123 = vld [vmem:[#allocation6 + $0x38] sm:$0xff]
    %v124 = vld [vmem:[#allocation6 + $0x40] sm:$0xff]
    %v125 = vld [vmem:[#allocation6 + $0x48] sm:$0xff]
    %v126 = vld [vmem:[#allocation6 + $0x50] sm:$0xff]
    %v127 = vld [vmem:[#allocation6 + $0x58] sm:$0xff]
    %v128 = vld [vmem:[#allocation6 + $0x60] sm:$0xff]
    %v129 = vld [vmem:[#allocation6 + $0x68] sm:$0xff]
    %v130 = vld [vmem:[#allocation6 + $0x70] sm:$0xff]
    %v131 = vld [vmem:[#allocation6 + $0x78] sm:$0xff]
    %v132 = vld [vmem:[%s4] sm:$0x1]
    %v134 = vperm.slane %v132, 0
    %136 = vmatpush.msra.mxu0 %v131
    %137 = vmatpush.msra.mxu0 %v130
    %138 = vmatpush.msra.mxu0 %v129
    %139 = vmatpush.msra.mxu0 %v128
    %140 = vmatpush.msra.mxu0 %v127
    %141 = vmatpush.msra.mxu0 %v126
    %142 = vmatpush.msra.mxu0 %v125
    %143 = vmatpush.msra.mxu0 %v124
    %144 = vmatpush.msra.mxu0 %v123
    %145 = vmatpush.msra.mxu0 %v122
    %146 = vmatpush.msra.mxu0 %v121
    %147 = vmatpush.msra.mxu0 %v120
    %148 = vmatpush.msra.mxu0 %v119
    %149 = vmatpush.msra.mxu0 %v118
    %150 = vmatpush.msra.mxu0 %v117
    %151 = vmatpush.msra.mxu0 %v116
    %152 = vmatmul.f32.gmra.mxu0 %v115
    %v153 = vpop.f32.mrf.mxu0
    %v154 = vadd.f32 %v134, %v153
    %155 = vdwg.mxu0
    %v156 = vmax.f32 %v154, 0.0
    %v157 = vld [vmem:[#allocation7] sm:$0xff]
    %v158 = vld [vmem:[#allocation7 + $0x8] sm:$0xff]
    %v159 = vld [vmem:[#allocation7 + $0x10] sm:$0xff]
    %v160 = vld [vmem:[#allocation7 + $0x18] sm:$0xff]
    %v161 = vld [vmem:[#allocation7 + $0x20] sm:$0xff]
    %v162 = vld [vmem:[#allocation7 + $0x28] sm:$0xff]
    %v163 = vld [vmem:[#allocation7 + $0x30] sm:$0xff]
    %v164 = vld [vmem:[#allocation7 + $0x38] sm:$0xff]
    %v165 = vld [vmem:[#allocation7 + $0x40] sm:$0xff]
    %v166 = vld [vmem:[#allocation7 + $0x48] sm:$0xff]
    %v167 = vld [vmem:[#allocation7 + $0x50] sm:$0xff]
    %v168 = vld [vmem:[#allocation7 + $0x58] sm:$0xff]
    %v169 = vld [vmem:[#allocation7 + $0x60] sm:$0xff]
    %v170 = vld [vmem:[#allocation7 + $0x68] sm:$0xff]
    %v171 = vld [vmem:[#allocation7 + $0x70] sm:$0xff]
    %v172 = vld [vmem:[#allocation7 + $0x78] sm:$0xff]
    %v173 = vld [vmem:[%s6] sm:$0x1]
    %v175 = vperm.slane %v173, 0
    %177 = vmatpush.msra.mxu0 %v172
    %178 = vmatpush.msra.mxu0 %v171
    %179 = vmatpush.msra.mxu0 %v170
    %180 = vmatpush.msra.mxu0 %v169
    %181 = vmatpush.msra.mxu0 %v168
    %182 = vmatpush.msra.mxu0 %v167
    %183 = vmatpush.msra.mxu0 %v166
    %184 = vmatpush.msra.mxu0 %v165
    %185 = vmatpush.msra.mxu0 %v164
    %186 = vmatpush.msra.mxu0 %v163
    %187 = vmatpush.msra.mxu0 %v162
    %188 = vmatpush.msra.mxu0 %v161
    %189 = vmatpush.msra.mxu0 %v160
    %190 = vmatpush.msra.mxu0 %v159
    %191 = vmatpush.msra.mxu0 %v158
    %192 = vmatpush.msra.mxu0 %v157
    %193 = vmatmul.f32.gmra.mxu0 %v156
    %v194 = vpop.f32.mrf.mxu0
    %v195 = vadd.f32 %v175, %v194
    %196 = vdwg.mxu0
    %v197 = vadd.f32 %v115, %v195
    %198 = vst [vmem:[%s7] sm:$0xff] %v197
    // Predicated region
    $region46: #{base_model_forward.1} parent=1 // pred_check
      _
    $region47: #{base_model_forward.1} parent=1 // pred_check_branch
      %200 = sbr.rel (0) target = $region49
    $region48: #{base_model_forward.1} parent=1 // pred_region
      _
    $region49: #{base_model_forward.1} parent=1 // pred_fallthru
      _
    // Predicated region
    $region50: #{base_model_forward.1} parent=1 // pred_check
      _
    $region51: #{base_model_forward.1} parent=1 // pred_check_branch
      %202 = sbr.rel (0) target = $region53
    $region52: #{base_model_forward.1} parent=1 // pred_region
      _
    $region53: #{base_model_forward.1} parent=1 // pred_fallthru
      _
    %203 = vsyncpa [#allocation3], 1
    %204 = vsyncpa [#allocation5], 1
    %205 = vsyncpa [#allocation8], 1

</llo_original>
